<compile_context>
chip_gen: v7x
topology: tpu7x:2x2x1
jax: 0.10.0
libtpu: 0.0.40
codegen_flags: <defaults>
</compile_context>

<pallas_src>
import math

import jax
import jax.numpy as jnp
from jax.experimental import pallas as pl
from jax.experimental.pallas import tpu as pltpu


def _biasfree_layernorm_kernel(x_ref, w_ref, o_ref):
    # x: (TR, C) row tile; w: (1, C); normalize over the last (lane) axis.
    x = x_ref[...].astype(jnp.float32)
    inv_c = 1.0 / x.shape[-1]
    mean = jnp.sum(x, axis=-1, keepdims=True) * inv_c
    mean_sq = jnp.sum(x * x, axis=-1, keepdims=True) * inv_c
    # One-pass E[x^2] - E[x]^2; clamp: cancellation can push it slightly negative.
    var = jnp.maximum(mean_sq - mean * mean, 0.0)
    inv_sigma = jax.lax.rsqrt(var + 1e-5)
    w = w_ref[...].astype(jnp.float32)                # (1, C) broadcast in-kernel
    o_ref[...] = (x * inv_sigma * w).astype(o_ref.dtype)


def _chip_budgets():
    """(per-step VMEM working-set budget, vmem_limit cap) per TPU generation."""
    try:
        kind = jax.devices()[0].device_kind.lower()
    except Exception:  # pragma: no cover - defensive, e.g. no devices yet
        kind = ""
    if "v5" in kind:
        # v5e: ~0.8 TB/s HBM; ~2-3 MiB blocks already sit on the roofline plateau.
        return 24 << 20, 48 << 20
    if "v6" in kind:
        # v6e: 128 MiB physical VMEM; use the headroom to cut grid-step count.
        return 48 << 20, 96 << 20
    if "v7" in kind:
        # v7x: 64 MiB VMEM per TC; keep blocks ~4-6 MiB and the limit well under 48 MiB.
        return 28 << 20, 44 << 20
    return 24 << 20, 40 << 20


def _pick_row_tile(rows, cols, itemsize, vmem_budget_bytes, min_steps=4):
    """Largest row tile whose per-step VMEM footprint (double-buffered in+out
    blocks + ~3 f32 block-sized temporaries) fits the budget, leaving at least
    `min_steps` grid steps when the row count allows (2 TCs x double-buffering
    on v7x), and respecting the sublane packing constraint (multiple of the
    native sublane tile, or the full dim)."""
    sub = 8 * max(4 // itemsize, 1)                    # f32: 8, bf16: 16, int8: 32
    bytes_per_row = max(cols * (4 * itemsize + 3 * 4), 1)
    tr = max(vmem_budget_bytes // bytes_per_row, 1)
    if rows // tr < min_steps:
        tr = max(rows // min_steps, 1)
    if tr >= rows:
        return rows                                    # single full block (tiny input)
    tr = (tr // sub) * sub
    if tr == 0:
        return rows                                    # too few rows for a packed tile
    return tr


@jax.jit
def biasfree_layernorm(x, weight):
    orig_shape = x.shape
    C = orig_shape[-1]
    R = math.prod(orig_shape[:-1]) if len(orig_shape) > 1 else 1
    itemsize = jnp.dtype(x.dtype).itemsize

    budget, vmem_cap = _chip_budgets()
    tr = _pick_row_tile(R, C, itemsize, budget)
    grid = (pl.cdiv(R, tr),)                           # ragged last block is masked

    # Explicit scoped-VMEM limit derived from the chosen tile (+25% headroom),
    # so larger tiles don't silently trip the per-generation defaults.
    est = tr * C * (4 * itemsize + 3 * 4)
    vmem_limit = int(min(vmem_cap, max(est * 1.25, 16 << 20)))

    x2 = x.reshape(R, C)
    w2 = weight.reshape(1, C)

    out = pl.pallas_call(
        _biasfree_layernorm_kernel,
        out_shape=jax.ShapeDtypeStruct((R, C), x.dtype),
        grid_spec=pltpu.PrefetchScalarGridSpec(
            num_scalar_prefetch=0,
            grid=grid,
            in_specs=[
                pl.BlockSpec((tr, C), lambda i: (i, 0)),   # row tile of x
                pl.BlockSpec((1, C), lambda i: (0, 0)),    # weight, same block every step
            ],
            out_specs=pl.BlockSpec((tr, C), lambda i: (i, 0)),
        ),
        compiler_params=pltpu.CompilerParams(
            dimension_semantics=("parallel",),             # row axis is embarrassingly parallel
            vmem_limit_bytes=vmem_limit,
        ),
    )(x2, w2)
    return out.reshape(orig_shape)


def _reference(x, weight):
    # Matches torch: sigma = x.var(-1, unbiased=False); x / sqrt(sigma+1e-5) * w
    xf = x.astype(jnp.float32)
    sigma = jnp.var(xf, axis=-1, keepdims=True)
    return (xf / jnp.sqrt(sigma + 1e-5) * weight.astype(jnp.float32)).astype(x.dtype)


if __name__ == "__main__":
    key = jax.random.PRNGKey(0)
    kx, kw, kr = jax.random.split(key, 3)

    # Typical FSRNet usage: x rearranged to (b, h*w, c), normalized over c.
    B, HW, C = 2, 16 * 16, 128
    x = jax.random.normal(kx, (B, HW, C), jnp.float32)
    weight = 1.0 + 0.1 * jax.random.normal(kw, (C,), jnp.float32)

    out = jax.block_until_ready(biasfree_layernorm(x, weight))
    assert out.shape == x.shape
    assert bool(jnp.all(jnp.isfinite(out)))
    ref = _reference(x, weight)
    assert bool(jnp.allclose(out, ref, rtol=1e-4, atol=1e-4)), float(
        jnp.max(jnp.abs(out - ref))
    )

    # Ragged row count (R=200 not a multiple of the row tile) exercises the
    # pl.cdiv grid + masked last block; nonzero mean exercises the var clamp.
    x_r = jax.random.normal(kr, (2, 100, C), jnp.float32) + 3.0
    out_r = jax.block_until_ready(biasfree_layernorm(x_r, weight))
    ref_r = _reference(x_r, weight)
    assert bool(jnp.all(jnp.isfinite(out_r)))
    assert bool(jnp.allclose(out_r, ref_r, rtol=1e-4, atol=1e-4)), float(
        jnp.max(jnp.abs(out_r - ref_r))
    )

    # bf16 path exercises the dtype-aware tile picker.
    x_b = x.astype(jnp.bfloat16)
    w_b = weight.astype(jnp.bfloat16)
    out_b = jax.block_until_ready(biasfree_layernorm(x_b, w_b))
    ref_b = _reference(x_b, w_b)
    assert bool(
        jnp.allclose(
            out_b.astype(jnp.float32), ref_b.astype(jnp.float32), rtol=2e-2, atol=2e-2
        )
    )

    print("KERNEL_OK")
</pallas_src>

<mosaic_0001>
module attributes {stable_mosaic.version = 11 : i64} {
  func.func @_biasfree_layernorm_kernel(%arg0: i32, %arg1: memref<128x128xf32, #tpu.memory_space<vmem>>, %arg2: memref<1x128xf32, #tpu.memory_space<vmem>>, %arg3: memref<128x128xf32, #tpu.memory_space<vmem>>) attributes {dimension_semantics = [#tpu.dimension_semantics<parallel>], iteration_bounds = array<i64: 4>, scalar_prefetch = 0 : i64, scratch_operands = 0 : i64, tpu.core_type = #tpu.core_type<tc>, window_params = [{transform_indices = @transform_0, window_bounds = array<i64: 128, 128>}, {pipeline_mode = #tpu.pipeline_mode<synchronous>, transform_indices = @transform_1, window_bounds = array<i64: 1, 128>}, {transform_indices = @transform_2, window_bounds = array<i64: 128, 128>}]} {
    %c0 = arith.constant 0 : index
    %c0_0 = arith.constant 0 : index
    %0 = vector.load %arg1[%c0, %c0_0] : memref<128x128xf32, #tpu.memory_space<vmem>>, vector<128x128xf32>
    %cst = arith.constant dense<0.000000e+00> : vector<128xf32>
    %1 = vector.multi_reduction <add>, %0, %cst [1] : vector<128x128xf32> to vector<128xf32>
    %2 = vector.shape_cast %1 : vector<128xf32> to vector<128x1xf32>
    %cst_1 = arith.constant 7.812500e-03 : f32
    %3 = vector.broadcast %cst_1 : f32 to vector<128x1xf32>
    %4 = arith.mulf %2, %3 : vector<128x1xf32>
    %5 = arith.mulf %0, %0 : vector<128x128xf32>
    %cst_2 = arith.constant dense<0.000000e+00> : vector<128xf32>
    %6 = vector.multi_reduction <add>, %5, %cst_2 [1] : vector<128x128xf32> to vector<128xf32>
    %7 = vector.shape_cast %6 : vector<128xf32> to vector<128x1xf32>
    %cst_3 = arith.constant 7.812500e-03 : f32
    %8 = vector.broadcast %cst_3 : f32 to vector<128x1xf32>
    %9 = arith.mulf %7, %8 : vector<128x1xf32>
    %10 = arith.mulf %4, %4 : vector<128x1xf32>
    %11 = arith.subf %9, %10 : vector<128x1xf32>
    %cst_4 = arith.constant 0.000000e+00 : f32
    %12 = vector.broadcast %cst_4 : f32 to vector<128x1xf32>
    %13 = arith.maximumf %11, %12 : vector<128x1xf32>
    %cst_5 = arith.constant 9.99999974E-6 : f32
    %14 = vector.broadcast %cst_5 : f32 to vector<128x1xf32>
    %15 = arith.addf %13, %14 : vector<128x1xf32>
    %16 = math.rsqrt %15 : vector<128x1xf32>
    %c0_6 = arith.constant 0 : index
    %c0_7 = arith.constant 0 : index
    %17 = vector.load %arg2[%c0_6, %c0_7] : memref<1x128xf32, #tpu.memory_space<vmem>>, vector<1x128xf32>
    %18 = vector.broadcast %16 : vector<128x1xf32> to vector<128x128xf32>
    %19 = arith.mulf %0, %18 : vector<128x128xf32>
    %20 = vector.broadcast %17 : vector<1x128xf32> to vector<128x128xf32>
    %21 = arith.mulf %19, %20 : vector<128x128xf32>
    %c0_8 = arith.constant 0 : index
    %c0_9 = arith.constant 0 : index
    %22 = vector.load %arg3[%c0_8, %c0_9] : memref<128x128xf32, #tpu.memory_space<vmem>>, vector<128x128xf32>
    tpu.vector_store %arg3[%c0_8, %c0_9], %21 {strides = array<i32>} : memref<128x128xf32, #tpu.memory_space<vmem>>, vector<128x128xf32>,
    return
  }
  func.func @transform_0(%arg0: i32) -> (i32, i32) {
    %c0_i32 = arith.constant 0 : i32
    %c0_i32_0 = arith.constant 0 : i32
    return %arg0, %c0_i32 : i32, i32
  }
  func.func @transform_1(%arg0: i32) -> (i32, i32) {
    %c0_i32 = arith.constant 0 : i32
    %c0_i32_0 = arith.constant 0 : i32
    %c0_i32_1 = arith.constant 0 : i32
    return %c0_i32, %c0_i32_0 : i32, i32
  }
  func.func @transform_2(%arg0: i32) -> (i32, i32) {
    %c0_i32 = arith.constant 0 : i32
    %c0_i32_0 = arith.constant 0 : i32
    return %arg0, %c0_i32 : i32, i32
  }
}

</mosaic_0001>

<llo_original>
// kernel: biasfree_layernorm.1
$region0: #{biasfree_layernorm.1}
  #allocation0 [shape = 'u32[]', space=smem, size = 0x4, offset = 0x4, fixed_abs, tag = 'smem constant byte address 0x4 - core index']
  #allocation1 [shape = 'u32[144,128]{1,0:T(1,128)}', space=vmem, size = 0x12000, scoped, tag = 'internal scratch']
  %s0 = inlined_call_operand.hbm [shape: f32[512,128], index: 0, kind: input, shape index: {}]
  %s1 = inlined_call_operand.vmem [shape: f32[1,128], index: 1, kind: input, shape index: {}]
  %s2 = inlined_call_operand.hbm [shape: f32[512,128], index: 2, kind: output, shape index: {}]
  %s3 = sld [smem:[#allocation0]]
  $region45: #{biasfree_layernorm.1} parent=0
    _
  %s5 = ssub.s32 1, %s3
  %s6 = scalar_select 0, %s5, %s3
  $region1: #{biasfree_layernorm.1} parent=0
    #allocation2 [shape = 'u8[131072]{0}', space=vmem, size = 0x20000, scoped, tag = 'input window, operand 0']
    #allocation3 [shape = 's32[2]{0}', space=sflag, size = 0x8, scoped, tag = 'scoped memory for biasfree_layernorm.1']
    #allocation4 [shape = 's32[2]{0}', space=sflag, size = 0x8, scoped, tag = 'scoped memory for biasfree_layernorm.1']
    #allocation5 [shape = 'u8[131072]{0}', space=vmem, size = 0x20000, scoped, tag = 'output window, operand 0']
    %7 = vsyncpa [#allocation3], 0
    %s8 = scalar_lea.sflag [#allocation3], 1
    %9 = vsyncpa %s8, 0
    %10 = vsyncpa [#allocation4], 0
    %s11 = scalar_lea.sflag [#allocation4], 1
    %12 = vsyncpa %s11, 0
    loop: start=0, step=1, limit=6
    $region2: #{biasfree_layernorm.1} parent=1 // loop_pre_header
      _
    $region3: #{biasfree_layernorm.1} parent=1 // loop_header
      %s14 = sphi 0, %s18
      %p15 = scmp.ge.s32.totalorder %s14, 6
      %s24 = sphi 0, %s26
      %s27 = sphi 0, %s24
      %s28 = sphi 0, %s27
      %s44 = sphi 0, %s28
      %s48 = sphi 0, %s48
      %s50 = sphi 0, %s48
      %s51 = sphi 0, %s50
      %s65 = sphi 0, %s51
      %s71 = sphi 0, %s73
      %s74 = sphi 0, %s71
      %s75 = sphi 0, %s74
      %s91 = sphi 0, %s75
    $region4: #{biasfree_layernorm.1} parent=1 // loop_header_branch
      %17 = sbr.rel (%p15) target = $region8
    $region5: #{biasfree_layernorm.1} parent=1 // loop_body
      %s19 = ssub.s32 %s14, 1
      %s20 = ssub.s32 %s14, 2
      %s21 = sadd.s32 %s14, 1
      %s22 = ssub.s32 %s14, %s21
      %p23 = scmp.eq.s32.totalorder %s22, 0
      %s25 = sadd.s32 %s24, 1
      %s26 = scalar_select %p23, %s24, %s25
      %p29 = pneg %p23
      %p30 = scmp.eq.s32.totalorder %s14, 3
      %p31 = por %p29, %p30
      %p32 = scmp.ne.s32.totalorder %s24, %s27
      %p33 = scmp.eq.s32.totalorder %s14, 0
      %p34 = por %p32, %p33
      %p35 = scmp.ne.s32.totalorder %s24, %s27
      %p36 = scmp.eq.s32.totalorder %s19, 3
      %p37 = por %p35, %p36
      %p38 = scmp.ne.s32.totalorder %s27, %s28
      %p39 = scmp.eq.s32.totalorder %s19, 0
      %p40 = por %p38, %p39
      %p41 = scmp.ne.s32.totalorder %s27, %s28
      %p42 = scmp.eq.s32.totalorder %s20, 3
      %p43 = por %p41, %p42
      %p45 = scmp.ne.s32.totalorder %s28, %s44
      %p46 = scmp.eq.s32.totalorder %s20, 0
      %p47 = por %p45, %p46
      %s49 = sadd.s32 %s48, 1
      %p52 = scmp.eq.s32.totalorder %s14, 3
      %p53 = scmp.ne.s32.totalorder %s48, %s50
      %p54 = scmp.eq.s32.totalorder %s14, 0
      %p55 = por %p53, %p54
      %p56 = scmp.ne.s32.totalorder %s48, %s50
      %p57 = scmp.eq.s32.totalorder %s19, 3
      %p58 = por %p56, %p57
      %p59 = scmp.ne.s32.totalorder %s50, %s51
      %p60 = scmp.eq.s32.totalorder %s19, 0
      %p61 = por %p59, %p60
      %p62 = scmp.ne.s32.totalorder %s50, %s51
      %p63 = scmp.eq.s32.totalorder %s20, 3
      %p64 = por %p62, %p63
      %p66 = scmp.ne.s32.totalorder %s51, %s65
      %p67 = scmp.eq.s32.totalorder %s20, 0
      %p68 = por %p66, %p67
      %s69 = ssub.s32 %s14, %s21
      %p70 = scmp.eq.s32.totalorder %s69, 0
      %s72 = sadd.s32 %s71, 1
      %s73 = scalar_select %p70, %s71, %s72
      %p76 = pneg %p70
      %p77 = scmp.eq.s32.totalorder %s14, 3
      %p78 = por %p76, %p77
      %p79 = scmp.ne.s32.totalorder %s71, %s74
      %p80 = scmp.eq.s32.totalorder %s14, 0
      %p81 = por %p79, %p80
      %p82 = scmp.ne.s32.totalorder %s71, %s74
      %p83 = scmp.eq.s32.totalorder %s19, 3
      %p84 = por %p82, %p83
      %p85 = scmp.ne.s32.totalorder %s74, %s75
      %p86 = scmp.eq.s32.totalorder %s19, 0
      %p87 = por %p85, %p86
      %p88 = scmp.ne.s32.totalorder %s74, %s75
      %p89 = scmp.eq.s32.totalorder %s20, 3
      %p90 = por %p88, %p89
      %p92 = scmp.ne.s32.totalorder %s75, %s91
      %p93 = scmp.eq.s32.totalorder %s20, 0
      %p94 = por %p92, %p93
      %p95 = scmp.le.s32.totalorder 1, %s14
      %p96 = scmp.lt.s32.totalorder %s14, 5
      %p97 = pnand %p95, %p96
      %p98 = pneg %p97
      // Predicated region
      $region9: #{biasfree_layernorm.1} parent=5 // pred_check
        _
      $region10: #{biasfree_layernorm.1} parent=5 // pred_check_branch
        %100 = sbr.rel (%p97) target = $region12
      $region11: #{biasfree_layernorm.1} parent=5 // pred_region
        %s101 = ssub.s32 %s14, 1
        // Predicated region
        $region13: #{biasfree_layernorm.1} parent=11 // pred_check
          %p102 = pneg %p61
        $region14: #{biasfree_layernorm.1} parent=11 // pred_check_branch
          %104 = sbr.rel (%p102) target = $region16
        $region15: #{biasfree_layernorm.1} parent=11 // pred_region
          _
        $region16: #{biasfree_layernorm.1} parent=11 // pred_fallthru
          _
      $region12: #{biasfree_layernorm.1} parent=5 // pred_fallthru
        _
      %p105 = scmp.lt.s32.totalorder %s14, 4
      // Predicated region
      $region17: #{biasfree_layernorm.1} parent=5 // pred_check
        %p106 = pneg %p105
      $region18: #{biasfree_layernorm.1} parent=5 // pred_check_branch
        %108 = sbr.rel (%p106) target = $region20
      $region19: #{biasfree_layernorm.1} parent=5 // pred_region
        // Predicated region
        $region21: #{biasfree_layernorm.1} parent=19 // pred_check
          %p109 = pneg %p34
        $region22: #{biasfree_layernorm.1} parent=19 // pred_check_branch
          %111 = sbr.rel (%p109) target = $region24
        $region23: #{biasfree_layernorm.1} parent=19 // pred_region
          %s112 = sand.u32 %s24, 1
          %s113 = scalar_lea.sflag [#allocation3], %s112
          %s114 = sand.u32 %s24, 1
          %s115 = smul.addr %s114, 128
          %s116 = scalar_lea.vmem [#allocation2], %s115
          %s117 = smul.u32 16, %s14
          %s119 = ssub.s32 2048, 2048
          %120 = vsyncadd %s113, %s119
          %s121 = smul.addr %s117, 128
          %s122 = scalar_lea.hbm %s0, %s121
          %s123 = sshll.u32 %s116, 4
          %s124 = int_to_ptr.vmem [resolvable:$true] %s123
          %129 = dma.hbm_to_vmem [thread:$0]  %s122, 2048, %s124, %s113, 128, 128, 8
        $region24: #{biasfree_layernorm.1} parent=19 // pred_fallthru
          _
      $region20: #{biasfree_layernorm.1} parent=5 // pred_fallthru
        _
      %p130 = scmp.le.s32.totalorder 1, %s14
      %p131 = scmp.lt.s32.totalorder %s14, 5
      %p132 = pnand %p130, %p131
      %p133 = pneg %p132
      // Predicated region
      $region25: #{biasfree_layernorm.1} parent=5 // pred_check
        _
      $region26: #{biasfree_layernorm.1} parent=5 // pred_check_branch
        %135 = sbr.rel (%p132) target = $region28
      $region27: #{biasfree_layernorm.1} parent=5 // pred_region
        %s136 = ssub.s32 %s14, 1
        %s137 = sand.u32 %s27, 1
        %s138 = scalar_lea.sflag [#allocation3], %s137
        %s139 = sand.u32 %s27, 1
        %s140 = smul.addr %s139, 128
        %s141 = scalar_lea.vmem [#allocation2], %s140
        // Predicated region
        $region29: #{biasfree_layernorm.1} parent=27 // pred_check
          %p142 = pneg %p40
        $region30: #{biasfree_layernorm.1} parent=27 // pred_check_branch
          %144 = sbr.rel (%p142) target = $region32
        $region31: #{biasfree_layernorm.1} parent=27 // pred_region
          %145 = dma.done %s138, 2048
        $region32: #{biasfree_layernorm.1} parent=27 // pred_fallthru
          _
        %s146 = sand.u32 %s27, 1
        %s147 = scalar_lea.sflag [#allocation3], %s146
        %s148 = sand.u32 %s27, 1
        %s149 = smul.addr %s148, 128
        %s150 = scalar_lea.vmem [#allocation2], %s149
        %p151 = pneg %p40
        %p152 = pneg %p37
        %p153 = pneg %p61
        %p154 = pneg %p58
        %p155 = pneg %p87
        %p156 = pneg %p84
        %s157 = sand.u32 %s74, 1
        %s158 = scalar_lea.sflag [#allocation4], %s157
        %s159 = sand.u32 %s74, 1
        %s160 = smul.addr %s159, 128
        %s161 = scalar_lea.vmem [#allocation5], %s160
        %s162 = smul.u32 16, %s19
        %s163 = smul.u32 16, %s19
        %v164 = vld [vmem:[%s141] sm:$0xff]
        %v165 = vld [vmem:[%s141 + $0x8] sm:$0xff]
        %v166 = vld [vmem:[%s141 + $0x10] sm:$0xff]
        %v167 = vld [vmem:[%s141 + $0x18] sm:$0xff]
        %v168 = vld [vmem:[%s141 + $0x20] sm:$0xff]
        %v169 = vld [vmem:[%s141 + $0x28] sm:$0xff]
        %v170 = vld [vmem:[%s141 + $0x30] sm:$0xff]
        %v171 = vld [vmem:[%s141 + $0x38] sm:$0xff]
        %v172 = vld [vmem:[%s141 + $0x40] sm:$0xff]
        %v173 = vld [vmem:[%s141 + $0x48] sm:$0xff]
        %v174 = vld [vmem:[%s141 + $0x50] sm:$0xff]
        %v175 = vld [vmem:[%s141 + $0x58] sm:$0xff]
        %v176 = vld [vmem:[%s141 + $0x60] sm:$0xff]
        %v177 = vld [vmem:[%s141 + $0x68] sm:$0xff]
        %v178 = vld [vmem:[%s141 + $0x70] sm:$0xff]
        %v179 = vld [vmem:[%s141 + $0x78] sm:$0xff]
        %180 = vadd.xlane.f32.xlu0 %v164
        %v181 = vpop.xlane.xlu0 %180
        %182 = vadd.xlane.f32.xlu0 %v165
        %v183 = vpop.xlane.xlu0 %182
        %184 = vadd.xlane.f32.xlu0 %v166
        %v185 = vpop.xlane.xlu0 %184
        %186 = vadd.xlane.f32.xlu0 %v167
        %v187 = vpop.xlane.xlu0 %186
        %188 = vadd.xlane.f32.xlu0 %v168
        %v189 = vpop.xlane.xlu0 %188
        %190 = vadd.xlane.f32.xlu0 %v169
        %v191 = vpop.xlane.xlu0 %190
        %192 = vadd.xlane.f32.xlu0 %v170
        %v193 = vpop.xlane.xlu0 %192
        %194 = vadd.xlane.f32.xlu0 %v171
        %v195 = vpop.xlane.xlu0 %194
        %196 = vadd.xlane.f32.xlu0 %v172
        %v197 = vpop.xlane.xlu0 %196
        %198 = vadd.xlane.f32.xlu0 %v173
        %v199 = vpop.xlane.xlu0 %198
        %200 = vadd.xlane.f32.xlu0 %v174
        %v201 = vpop.xlane.xlu0 %200
        %202 = vadd.xlane.f32.xlu0 %v175
        %v203 = vpop.xlane.xlu0 %202
        %204 = vadd.xlane.f32.xlu0 %v176
        %v205 = vpop.xlane.xlu0 %204
        %206 = vadd.xlane.f32.xlu0 %v177
        %v207 = vpop.xlane.xlu0 %206
        %208 = vadd.xlane.f32.xlu0 %v178
        %v209 = vpop.xlane.xlu0 %208
        %210 = vadd.xlane.f32.xlu0 %v179
        %v211 = vpop.xlane.xlu0 %210
        %v212 = vmul.f32 %v181, 0.0078125
        %v213 = vmul.f32 %v183, 0.0078125
        %v214 = vmul.f32 %v185, 0.0078125
        %v215 = vmul.f32 %v187, 0.0078125
        %v216 = vmul.f32 %v189, 0.0078125
        %v217 = vmul.f32 %v191, 0.0078125
        %v218 = vmul.f32 %v193, 0.0078125
        %v219 = vmul.f32 %v195, 0.0078125
        %v220 = vmul.f32 %v197, 0.0078125
        %v221 = vmul.f32 %v199, 0.0078125
        %v222 = vmul.f32 %v201, 0.0078125
        %v223 = vmul.f32 %v203, 0.0078125
        %v224 = vmul.f32 %v205, 0.0078125
        %v225 = vmul.f32 %v207, 0.0078125
        %v226 = vmul.f32 %v209, 0.0078125
        %v227 = vmul.f32 %v211, 0.0078125
        %v228 = vmul.f32 %v164, %v164
        %v229 = vmul.f32 %v165, %v165
        %v230 = vmul.f32 %v166, %v166
        %v231 = vmul.f32 %v167, %v167
        %v232 = vmul.f32 %v168, %v168
        %v233 = vmul.f32 %v169, %v169
        %v234 = vmul.f32 %v170, %v170
        %v235 = vmul.f32 %v171, %v171
        %v236 = vmul.f32 %v172, %v172
        %v237 = vmul.f32 %v173, %v173
        %v238 = vmul.f32 %v174, %v174
        %v239 = vmul.f32 %v175, %v175
        %v240 = vmul.f32 %v176, %v176
        %v241 = vmul.f32 %v177, %v177
        %v242 = vmul.f32 %v178, %v178
        %v243 = vmul.f32 %v179, %v179
        %244 = vadd.xlane.f32.xlu0 %v228
        %v245 = vpop.xlane.xlu0 %244
        %246 = vadd.xlane.f32.xlu0 %v229
        %v247 = vpop.xlane.xlu0 %246
        %248 = vadd.xlane.f32.xlu0 %v230
        %v249 = vpop.xlane.xlu0 %248
        %250 = vadd.xlane.f32.xlu0 %v231
        %v251 = vpop.xlane.xlu0 %250
        %252 = vadd.xlane.f32.xlu0 %v232
        %v253 = vpop.xlane.xlu0 %252
        %254 = vadd.xlane.f32.xlu0 %v233
        %v255 = vpop.xlane.xlu0 %254
        %256 = vadd.xlane.f32.xlu0 %v234
        %v257 = vpop.xlane.xlu0 %256
        %258 = vadd.xlane.f32.xlu0 %v235
        %v259 = vpop.xlane.xlu0 %258
        %260 = vadd.xlane.f32.xlu0 %v236
        %v261 = vpop.xlane.xlu0 %260
        %262 = vadd.xlane.f32.xlu0 %v237
        %v263 = vpop.xlane.xlu0 %262
        %264 = vadd.xlane.f32.xlu0 %v238
        %v265 = vpop.xlane.xlu0 %264
        %266 = vadd.xlane.f32.xlu0 %v239
        %v267 = vpop.xlane.xlu0 %266
        %268 = vadd.xlane.f32.xlu0 %v240
        %v269 = vpop.xlane.xlu0 %268
        %270 = vadd.xlane.f32.xlu0 %v241
        %v271 = vpop.xlane.xlu0 %270
        %272 = vadd.xlane.f32.xlu0 %v242
        %v273 = vpop.xlane.xlu0 %272
        %274 = vadd.xlane.f32.xlu0 %v243
        %v275 = vpop.xlane.xlu0 %274
        %v276 = vmul.f32 %v245, 0.0078125
        %v277 = vmul.f32 %v247, 0.0078125
        %v278 = vmul.f32 %v249, 0.0078125
        %v279 = vmul.f32 %v251, 0.0078125
        %v280 = vmul.f32 %v253, 0.0078125
        %v281 = vmul.f32 %v255, 0.0078125
        %v282 = vmul.f32 %v257, 0.0078125
        %v283 = vmul.f32 %v259, 0.0078125
        %v284 = vmul.f32 %v261, 0.0078125
        %v285 = vmul.f32 %v263, 0.0078125
        %v286 = vmul.f32 %v265, 0.0078125
        %v287 = vmul.f32 %v267, 0.0078125
        %v288 = vmul.f32 %v269, 0.0078125
        %v289 = vmul.f32 %v271, 0.0078125
        %v290 = vmul.f32 %v273, 0.0078125
        %v291 = vmul.f32 %v275, 0.0078125
        %v292 = vmul.f32 %v212, %v212
        %v293 = vmul.f32 %v213, %v213
        %v294 = vmul.f32 %v214, %v214
        %v295 = vmul.f32 %v215, %v215
        %v296 = vmul.f32 %v216, %v216
        %v297 = vmul.f32 %v217, %v217
        %v298 = vmul.f32 %v218, %v218
        %v299 = vmul.f32 %v219, %v219
        %v300 = vmul.f32 %v220, %v220
        %v301 = vmul.f32 %v221, %v221
        %v302 = vmul.f32 %v222, %v222
        %v303 = vmul.f32 %v223, %v223
        %v304 = vmul.f32 %v224, %v224
        %v305 = vmul.f32 %v225, %v225
        %v306 = vmul.f32 %v226, %v226
        %v307 = vmul.f32 %v227, %v227
        %v308 = vsub.f32 %v276, %v292
        %v309 = vsub.f32 %v277, %v293
        %v310 = vsub.f32 %v278, %v294
        %v311 = vsub.f32 %v279, %v295
        %v312 = vsub.f32 %v280, %v296
        %v313 = vsub.f32 %v281, %v297
        %v314 = vsub.f32 %v282, %v298
        %v315 = vsub.f32 %v283, %v299
        %v316 = vsub.f32 %v284, %v300
        %v317 = vsub.f32 %v285, %v301
        %v318 = vsub.f32 %v286, %v302
        %v319 = vsub.f32 %v287, %v303
        %v320 = vsub.f32 %v288, %v304
        %v321 = vsub.f32 %v289, %v305
        %v322 = vsub.f32 %v290, %v306
        %v323 = vsub.f32 %v291, %v307
        %v324 = vmax.f32 %v308, 0.0
        %v325 = vmax.f32 %v309, 0.0
        %v326 = vmax.f32 %v310, 0.0
        %v327 = vmax.f32 %v311, 0.0
        %v328 = vmax.f32 %v312, 0.0
        %v329 = vmax.f32 %v313, 0.0
        %v330 = vmax.f32 %v314, 0.0
        %v331 = vmax.f32 %v315, 0.0
        %v332 = vmax.f32 %v316, 0.0
        %v333 = vmax.f32 %v317, 0.0
        %v334 = vmax.f32 %v318, 0.0
        %v335 = vmax.f32 %v319, 0.0
        %v336 = vmax.f32 %v320, 0.0
        %v337 = vmax.f32 %v321, 0.0
        %v338 = vmax.f32 %v322, 0.0
        %v339 = vmax.f32 %v323, 0.0
        %v340 = vadd.f32 %v324, 1e-05
        %v341 = vadd.f32 %v325, 1e-05
        %v342 = vadd.f32 %v326, 1e-05
        %v343 = vadd.f32 %v327, 1e-05
        %v344 = vadd.f32 %v328, 1e-05
        %v345 = vadd.f32 %v329, 1e-05
        %v346 = vadd.f32 %v330, 1e-05
        %v347 = vadd.f32 %v331, 1e-05
        %v348 = vadd.f32 %v332, 1e-05
        %v349 = vadd.f32 %v333, 1e-05
        %v350 = vadd.f32 %v334, 1e-05
        %v351 = vadd.f32 %v335, 1e-05
        %v352 = vadd.f32 %v336, 1e-05
        %v353 = vadd.f32 %v337, 1e-05
        %v354 = vadd.f32 %v338, 1e-05
        %v355 = vadd.f32 %v339, 1e-05
        %v356 = vrsqrt.pop %v340
        %v357 = vrsqrt.pop %v341
        %v358 = vrsqrt.pop %v342
        %v359 = vrsqrt.pop %v343
        %v360 = vrsqrt.pop %v344
        %v361 = vrsqrt.pop %v345
        %v362 = vrsqrt.pop %v346
        %v363 = vrsqrt.pop %v347
        %v364 = vrsqrt.pop %v348
        %v365 = vrsqrt.pop %v349
        %v366 = vrsqrt.pop %v350
        %v367 = vrsqrt.pop %v351
        %v368 = vrsqrt.pop %v352
        %v369 = vrsqrt.pop %v353
        %v370 = vrsqrt.pop %v354
        %v371 = vrsqrt.pop %v355
        %v372 = vld [vmem:[%s1] sm:$0x1]
        %v373 = vmul.f32 %v164, %v356
        %v374 = vmul.f32 %v165, %v357
        %v375 = vmul.f32 %v166, %v358
        %v376 = vmul.f32 %v167, %v359
        %v377 = vmul.f32 %v168, %v360
        %v378 = vmul.f32 %v169, %v361
        %v379 = vmul.f32 %v170, %v362
        %v380 = vmul.f32 %v171, %v363
        %v381 = vmul.f32 %v172, %v364
        %v382 = vmul.f32 %v173, %v365
        %v383 = vmul.f32 %v174, %v366
        %v384 = vmul.f32 %v175, %v367
        %v385 = vmul.f32 %v176, %v368
        %v386 = vmul.f32 %v177, %v369
        %v387 = vmul.f32 %v178, %v370
        %v388 = vmul.f32 %v179, %v371
        %v390 = vlaneseq
        %v391 = vshrl.u32 %v390, 7
        %v392 = vsub.s32 0, %v391
        %v393 = vrot.slane %v372, %v392
        %v395 = vmul.f32 %v373, %v393
        %v396 = vmul.f32 %v374, %v393
        %v397 = vmul.f32 %v375, %v393
        %v398 = vmul.f32 %v376, %v393
        %v399 = vmul.f32 %v377, %v393
        %v400 = vmul.f32 %v378, %v393
        %v401 = vmul.f32 %v379, %v393
        %v402 = vmul.f32 %v380, %v393
        %v403 = vmul.f32 %v381, %v393
        %v404 = vmul.f32 %v382, %v393
        %v405 = vmul.f32 %v383, %v393
        %v406 = vmul.f32 %v384, %v393
        %v407 = vmul.f32 %v385, %v393
        %v408 = vmul.f32 %v386, %v393
        %v409 = vmul.f32 %v387, %v393
        %v410 = vmul.f32 %v388, %v393
        %411 = vst [vmem:[%s161] sm:$0xff] %v395
        %412 = vst [vmem:[%s161 + $0x8] sm:$0xff] %v396
        %413 = vst [vmem:[%s161 + $0x10] sm:$0xff] %v397
        %414 = vst [vmem:[%s161 + $0x18] sm:$0xff] %v398
        %415 = vst [vmem:[%s161 + $0x20] sm:$0xff] %v399
        %416 = vst [vmem:[%s161 + $0x28] sm:$0xff] %v400
        %417 = vst [vmem:[%s161 + $0x30] sm:$0xff] %v401
        %418 = vst [vmem:[%s161 + $0x38] sm:$0xff] %v402
        %419 = vst [vmem:[%s161 + $0x40] sm:$0xff] %v403
        %420 = vst [vmem:[%s161 + $0x48] sm:$0xff] %v404
        %421 = vst [vmem:[%s161 + $0x50] sm:$0xff] %v405
        %422 = vst [vmem:[%s161 + $0x58] sm:$0xff] %v406
        %423 = vst [vmem:[%s161 + $0x60] sm:$0xff] %v407
        %424 = vst [vmem:[%s161 + $0x68] sm:$0xff] %v408
        %425 = vst [vmem:[%s161 + $0x70] sm:$0xff] %v409
        %426 = vst [vmem:[%s161 + $0x78] sm:$0xff] %v410
        %s427 = sand.u32 %s74, 1
        %s428 = scalar_lea.sflag [#allocation4], %s427
        %s429 = sand.u32 %s74, 1
        %s430 = smul.addr %s429, 128
        %s431 = scalar_lea.vmem [#allocation5], %s430
        // Predicated region
        $region33: #{biasfree_layernorm.1} parent=27 // pred_check
          %p432 = pneg %p84
        $region34: #{biasfree_layernorm.1} parent=27 // pred_check_branch
          %434 = sbr.rel (%p432) target = $region36
        $region35: #{biasfree_layernorm.1} parent=27 // pred_region
          %s435 = smul.u32 16, %s19
          %s437 = ssub.s32 2048, 2048
          %438 = vsyncadd %s428, %s437
          %s439 = smul.addr %s435, 128
          %s440 = scalar_lea.hbm %s2, %s439
          %s441 = sshll.u32 %s431, 4
          %s442 = int_to_ptr.vmem [resolvable:$true] %s441
          %447 = dma.vmem_to_hbm [thread:$0]  %s442, 2048, %s440, %s428, 128, 128, 8
        $region36: #{biasfree_layernorm.1} parent=27 // pred_fallthru
          _
      $region28: #{biasfree_layernorm.1} parent=5 // pred_fallthru
        _
      %p448 = scmp.le.s32.totalorder 2, %s14
      // Predicated region
      $region37: #{biasfree_layernorm.1} parent=5 // pred_check
        %p449 = pneg %p448
      $region38: #{biasfree_layernorm.1} parent=5 // pred_check_branch
        %451 = sbr.rel (%p449) target = $region40
      $region39: #{biasfree_layernorm.1} parent=5 // pred_region
        %s452 = ssub.s32 %s14, 2
        // Predicated region
        $region41: #{biasfree_layernorm.1} parent=39 // pred_check
          %p453 = pneg %p90
        $region42: #{biasfree_layernorm.1} parent=39 // pred_check_branch
          %455 = sbr.rel (%p453) target = $region44
        $region43: #{biasfree_layernorm.1} parent=39 // pred_region
          %s456 = sand.u32 %s75, 1
          %s457 = scalar_lea.sflag [#allocation4], %s456
          %s458 = sand.u32 %s75, 1
          %s459 = smul.addr %s458, 128
          %s460 = scalar_lea.vmem [#allocation5], %s459
          %461 = dma.done %s457, 2048
        $region44: #{biasfree_layernorm.1} parent=39 // pred_fallthru
          _
      $region40: #{biasfree_layernorm.1} parent=5 // pred_fallthru
        _
    $region6: #{biasfree_layernorm.1} parent=1 // loop_footer
      %s18 = sadd.s32 1, %s14
    $region7: #{biasfree_layernorm.1} parent=1 // loop_footer_branch
      %13 = sbr.rel target = $region3
    $region8: #{biasfree_layernorm.1} parent=1 // loop_exit
      _
    %462 = vsyncpa [#allocation3], 1
    %s463 = scalar_lea.sflag [#allocation3], 1
    %464 = vsyncpa %s463, 1
    %465 = vsyncpa [#allocation4], 1
    %s466 = scalar_lea.sflag [#allocation4], 1
    %467 = vsyncpa %s466, 1

</llo_original>
